<compile_context>
chip_gen: v7x
topology: tpu7x:2x2x1
jax: 0.10.0
libtpu: 0.0.40
codegen_flags: <defaults>
</compile_context>

<pallas_src>
import functools

import jax
import jax.numpy as jnp
import numpy as np
from jax.experimental import pallas as pl
from jax.experimental.pallas import tpu as pltpu

PAD_ID = 0
CLS_ID = 101
TEMPERATURE = 0.02
EPS = 1e-12  # F.normalize default eps


def _round_up(x, m):
    return (x + m - 1) // m * m


# ---------------------------------------------------------------------------
# Kernel 1: fused ColBERT embedding head for ALL tokens (query + pos + neg)
#           linear -> pad/CLS mask -> L2 normalize, tiled over rows.
# ---------------------------------------------------------------------------
def embed_kernel(hid_ref, keep_ref, w_ref, b_ref, o_ref):
    # hid_ref : (Tr, H) bf16
    # keep_ref: (Tr, 1) f32   (0.0 for PAD/CLS/padding rows, else 1.0)
    # w_ref   : (H, D)  bf16 ; b_ref: (1, D) f32
    # o_ref   : (Tr, D) bf16
    e = jnp.dot(hid_ref[...], w_ref[...], preferred_element_type=jnp.float32)
    e = (e + b_ref[...]) * keep_ref[...]
    ssq = jnp.sum(e * e, axis=-1, keepdims=True)
    inv = jax.lax.rsqrt(jnp.maximum(ssq, EPS * EPS))   # == 1 / max(||e||, EPS)
    o_ref[...] = (e * inv).astype(o_ref.dtype)


def colbert_embed_rows(hid_rows, keep_rows, w_bf16, bias_row, *, row_tile):
    Rp, H = hid_rows.shape
    D = w_bf16.shape[1]
    grid = Rp // row_tile
    return pl.pallas_call(
        embed_kernel,
        out_shape=jax.ShapeDtypeStruct((Rp, D), jnp.bfloat16),
        grid=(grid,),
        in_specs=[
            pl.BlockSpec((row_tile, H), lambda i: (i, 0)),
            pl.BlockSpec((row_tile, 1), lambda i: (i, 0)),
            pl.BlockSpec((H, D), lambda i: (0, 0)),
            pl.BlockSpec((1, D), lambda i: (0, 0)),
        ],
        out_specs=pl.BlockSpec((row_tile, D), lambda i: (i, 0)),
        compiler_params=pltpu.CompilerParams(dimension_semantics=("parallel",)),
    )(hid_rows, keep_rows, w_bf16, bias_row)


# ---------------------------------------------------------------------------
# Kernel 2: fused MaxSim scores of every query against ALL docs (pos + neg)
# ---------------------------------------------------------------------------
def _score_kernel(qinv_ref, q_ref, d_ref, o_ref, *, n_docs, doc_len):
    # qinv_ref: (Bq,) f32 in SMEM  (1 / number of real query tokens)
    # q_ref   : (1, Lq, D) bf16    (this query's token embeddings)
    # d_ref   : (n_docs*doc_len, D) bf16  (pos docs first, then neg docs)
    # o_ref   : (1, 1, n_docs) f32
    b = pl.program_id(0)
    q = q_ref[0]                                                   # (Lq, D)
    # One lane-dense matmul against every doc token; contract the shared
    # last dim directly (no transpose inside the kernel).
    s = jnp.einsum("qd,kd->qk", q, d_ref[...],
                   preferred_element_type=jnp.float32)             # (Lq, n_docs*Ld)
    # MaxSim: max over each doc's Ld-token lane group, then sum over Lq.
    cols = [
        jnp.max(s[:, n * doc_len:(n + 1) * doc_len], axis=-1, keepdims=True)
        for n in range(n_docs)
    ]
    m = jnp.concatenate(cols, axis=-1)                             # (Lq, n_docs)
    o_ref[0] = jnp.sum(m, axis=0, keepdims=True) * qinv_ref[b]


def colbert_scores(q_emb, docs_flat, qinv, *, n_docs, doc_len):
    Bq, Lq, D = q_emb.shape
    Rd = docs_flat.shape[0]
    kernel = functools.partial(_score_kernel, n_docs=n_docs, doc_len=doc_len)
    out = pl.pallas_call(
        kernel,
        out_shape=jax.ShapeDtypeStruct((Bq, 1, n_docs), jnp.float32),
        grid=(Bq,),
        in_specs=[
            pl.BlockSpec(memory_space=pltpu.MemorySpace.SMEM),     # qinv (Bq,)
            pl.BlockSpec((1, Lq, D), lambda i: (i, 0, 0)),         # this query
            pl.BlockSpec((Rd, D), lambda i: (0, 0)),               # all doc tokens
        ],
        out_specs=pl.BlockSpec((1, 1, n_docs), lambda i: (i, 0, 0)),
        compiler_params=pltpu.CompilerParams(dimension_semantics=("parallel",)),
    )(qinv, q_emb, docs_flat)
    return out[:, 0, :]                                            # (Bq, n_docs)


# ---------------------------------------------------------------------------
# Full forward (glue in plain JAX, hot paths in the two Pallas kernels above)
# ---------------------------------------------------------------------------
def colbert_forward(params, query_ids, query_mask,
                    pos_ids, pos_mask, neg_ids, neg_mask):
    emb_table, w, b = params["emb_table"], params["w"], params["b"]
    H = emb_table.shape[1]
    D = w.shape[1]

    # stand-in encoder (glue): last_hidden_state = emb_table[input_ids]
    q_hidden = emb_table[query_ids]
    p_hidden = emb_table[pos_ids]
    n_hidden = emb_table[neg_ids]

    B, Lq = query_ids.shape[0], query_ids.shape[1] - 1
    Ld = pos_ids.shape[1] - 1
    N = neg_ids.shape[0]
    n_docs = B + N

    def rows_of(hid, ids):
        keep = jnp.logical_not(
            jnp.logical_or(ids[:, 1:] == PAD_ID, ids[:, 1:] == CLS_ID))
        return (hid[:, 1:, :].reshape(-1, H),
                keep.reshape(-1, 1).astype(jnp.float32))

    qh, qk = rows_of(q_hidden, query_ids)
    ph, pk = rows_of(p_hidden, pos_ids)
    nh, nk = rows_of(n_hidden, neg_ids)

    hid_all = jnp.concatenate([qh, ph, nh], axis=0).astype(jnp.bfloat16)
    keep_all = jnp.concatenate([qk, pk, nk], axis=0)

    R = hid_all.shape[0]
    # Row tile: multiple of 64 (bf16-friendly), aim for grid extent >= 2.
    row_tile = min(256, _round_up(-(-R // 2), 64))
    Rp = _round_up(R, row_tile)
    if Rp != R:
        hid_all = jnp.pad(hid_all, ((0, Rp - R), (0, 0)))
        keep_all = jnp.pad(keep_all, ((0, Rp - R), (0, 0)))

    emb_all = colbert_embed_rows(
        hid_all, keep_all, w.astype(jnp.bfloat16),
        b.reshape(1, D).astype(jnp.float32), row_tile=row_tile)

    nq = B * Lq
    nd = n_docs * Ld
    q_emb = emb_all[:nq].reshape(B, Lq, D)            # (B, Lq, D) bf16
    docs_flat = emb_all[nq:nq + nd]                   # (n_docs*Ld, D) bf16

    qinv = 1.0 / query_mask[:, 1:].sum(-1).astype(jnp.float32)     # (B,)

    scores = colbert_scores(q_emb, docs_flat, qinv,
                            n_docs=n_docs, doc_len=Ld)             # (B, B+N)

    pos_score = jnp.diagonal(scores[:, :B])                        # paired (B,)
    neg_score = scores[:, B:]                                      # (B, N)

    logits = jnp.concatenate([pos_score[:, None], neg_score], axis=1) / TEMPERATURE
    # CrossEntropyLoss with labels = 0
    loss = jnp.mean(jax.nn.logsumexp(logits, axis=-1) - logits[:, 0])
    return {"score": pos_score, "loss": loss}


# ---------------------------------------------------------------------------
# Pure-JAX reference (mirrors the kernels' bf16-storage / f32-accumulate policy)
# ---------------------------------------------------------------------------
def ref_forward(params, query_ids, query_mask, pos_ids, pos_mask, neg_ids, neg_mask):
    emb_table = params["emb_table"]
    w = params["w"].astype(jnp.bfloat16)
    b = params["b"].astype(jnp.float32)

    def embed(ids, hid):
        h = hid[:, 1:, :].astype(jnp.bfloat16)
        e = jnp.dot(h, w, preferred_element_type=jnp.float32) + b
        keep = jnp.logical_not(
            jnp.logical_or(ids[:, 1:] == PAD_ID, ids[:, 1:] == CLS_ID))
        e = e * keep[:, :, None].astype(jnp.float32)
        n = jnp.sqrt(jnp.sum(e * e, axis=-1, keepdims=True))
        return (e / jnp.maximum(n, EPS)).astype(jnp.bfloat16)

    q = embed(query_ids, emb_table[query_ids])
    p = embed(pos_ids, emb_table[pos_ids])
    ng = embed(neg_ids, emb_table[neg_ids])
    qsum = query_mask[:, 1:].sum(-1).astype(jnp.float32)
    pos = jnp.einsum("bqd,bkd->bqk", q, p,
                     preferred_element_type=jnp.float32).max(-1).sum(-1) / qsum
    neg = jnp.einsum("bqd,nkd->bnqk", q, ng,
                     preferred_element_type=jnp.float32).max(-1).sum(-1) / qsum[:, None]
    logits = jnp.concatenate([pos[:, None], neg], axis=1) / TEMPERATURE
    loss = jnp.mean(jax.nn.logsumexp(logits, axis=-1) - logits[:, 0])
    return {"score": pos, "loss": loss}


if __name__ == "__main__":
    key = jax.random.PRNGKey(0)
    k_emb, k_w, k_b, k_q, k_p, k_n = jax.random.split(key, 6)

    B = 2          # query / pos-doc batch
    N = 4          # number of negative docs
    Lq = 9         # query seq len (CLS + 8)
    Ld = 17        # doc seq len (CLS + 16)
    H = 32         # hidden size of the stand-in encoder
    D = 32         # colbert_dim
    V = 128        # vocab of the stand-in encoder (> CLS_ID)

    params = {
        "emb_table": jax.random.normal(k_emb, (V, H), dtype=jnp.float32) * 0.1,
        "w": jax.random.normal(k_w, (H, D), dtype=jnp.float32) * 0.05,  # torch weight.T
        "b": jax.random.normal(k_b, (D,), dtype=jnp.float32) * 0.01,
    }

    def make_ids(k, bsz, length, n_pad):
        ids = jax.random.randint(k, (bsz, length), 102, V, dtype=jnp.int32)
        ids = ids.at[:, 0].set(CLS_ID)
        if n_pad > 0:
            ids = ids.at[-1, length - n_pad:].set(PAD_ID)
        mask = (ids != PAD_ID).astype(jnp.int32)
        return ids, mask

    query_ids, query_mask = make_ids(k_q, B, Lq, 2)
    pos_ids, pos_mask = make_ids(k_p, B, Ld, 3)
    neg_ids, neg_mask = make_ids(k_n, N, Ld, 4)

    fwd = jax.jit(colbert_forward)
    out = fwd(params, query_ids, query_mask,
              pos_ids, pos_mask, neg_ids, neg_mask)
    jax.block_until_ready(out)

    ref = ref_forward(params, query_ids, query_mask,
                      pos_ids, pos_mask, neg_ids, neg_mask)
    jax.block_until_ready(ref)

    assert np.allclose(np.asarray(out["score"]), np.asarray(ref["score"]),
                       rtol=2e-2, atol=2e-2), "score mismatch vs reference"
    assert np.allclose(np.asarray(out["loss"]), np.asarray(ref["loss"]),
                       rtol=5e-2, atol=5e-2), "loss mismatch vs reference"

    print("KERNEL_OK")
</pallas_src>

<mosaic_0001>
module attributes {stable_mosaic.version = 11 : i64} {
  func.func @embed_kernel(%arg0: i32, %arg1: memref<64x32xbf16, #tpu.memory_space<vmem>>, %arg2: memref<64x1xf32, #tpu.memory_space<vmem>>, %arg3: memref<32x32xbf16, #tpu.memory_space<vmem>>, %arg4: memref<1x32xf32, #tpu.memory_space<vmem>>, %arg5: memref<64x32xbf16, #tpu.memory_space<vmem>>) attributes {dimension_semantics = [#tpu.dimension_semantics<parallel>], iteration_bounds = array<i64: 2>, scalar_prefetch = 0 : i64, scratch_operands = 0 : i64, tpu.core_type = #tpu.core_type<tc>, window_params = [{transform_indices = @transform_0, window_bounds = array<i64: 64, 32>}, {transform_indices = @transform_1, window_bounds = array<i64: 64, 1>}, {pipeline_mode = #tpu.pipeline_mode<synchronous>, transform_indices = @transform_2, window_bounds = array<i64: 32, 32>}, {pipeline_mode = #tpu.pipeline_mode<synchronous>, transform_indices = @transform_3, window_bounds = array<i64: 1, 32>}, {transform_indices = @transform_4, window_bounds = array<i64: 64, 32>}]} {
    %c0 = arith.constant 0 : index
    %c0_0 = arith.constant 0 : index
    %0 = vector.load %arg1[%c0, %c0_0] : memref<64x32xbf16, #tpu.memory_space<vmem>>, vector<64x32xbf16>
    %c0_1 = arith.constant 0 : index
    %c0_2 = arith.constant 0 : index
    %1 = vector.load %arg3[%c0_1, %c0_2] : memref<32x32xbf16, #tpu.memory_space<vmem>>, vector<32x32xbf16>
    %cst = arith.constant dense<0.000000e+00> : vector<64x32xf32>
    %2 = tpu.matmul %0, %1, %cst {dimension_numbers = #tpu.dot_dimension_numbers<[1], [0], [0], [1], [0, 0, 1, 1], [], []>} : vector<64x32xbf16>, vector<32x32xbf16>, vector<64x32xf32> -> vector<64x32xf32>
    %c0_3 = arith.constant 0 : index
    %c0_4 = arith.constant 0 : index
    %3 = vector.load %arg4[%c0_3, %c0_4] : memref<1x32xf32, #tpu.memory_space<vmem>>, vector<1x32xf32>
    %4 = vector.broadcast %3 : vector<1x32xf32> to vector<64x32xf32>
    %5 = arith.addf %2, %4 : vector<64x32xf32>
    %c0_5 = arith.constant 0 : index
    %c0_6 = arith.constant 0 : index
    %6 = vector.load %arg2[%c0_5, %c0_6] : memref<64x1xf32, #tpu.memory_space<vmem>>, vector<64x1xf32>
    %7 = vector.broadcast %6 : vector<64x1xf32> to vector<64x32xf32>
    %8 = arith.mulf %5, %7 : vector<64x32xf32>
    %9 = arith.mulf %8, %8 : vector<64x32xf32>
    %cst_7 = arith.constant dense<0.000000e+00> : vector<64xf32>
    %10 = vector.multi_reduction <add>, %9, %cst_7 [1] : vector<64x32xf32> to vector<64xf32>
    %11 = vector.shape_cast %10 : vector<64xf32> to vector<64x1xf32>
    %cst_8 = arith.constant 1.000000e-24 : f32
    %12 = vector.broadcast %cst_8 : f32 to vector<64x1xf32>
    %13 = arith.maximumf %11, %12 : vector<64x1xf32>
    %14 = math.rsqrt %13 : vector<64x1xf32>
    %15 = vector.broadcast %14 : vector<64x1xf32> to vector<64x32xf32>
    %16 = arith.mulf %8, %15 : vector<64x32xf32>
    %17 = arith.truncf %16 : vector<64x32xf32> to vector<64x32xbf16>
    %c0_9 = arith.constant 0 : index
    %c0_10 = arith.constant 0 : index
    %18 = vector.load %arg5[%c0_9, %c0_10] : memref<64x32xbf16, #tpu.memory_space<vmem>>, vector<64x32xbf16>
    tpu.vector_store %arg5[%c0_9, %c0_10], %17 {strides = array<i32>} : memref<64x32xbf16, #tpu.memory_space<vmem>>, vector<64x32xbf16>,
    return
  }
  func.func @transform_0(%arg0: i32) -> (i32, i32) {
    %c0_i32 = arith.constant 0 : i32
    %c0_i32_0 = arith.constant 0 : i32
    return %arg0, %c0_i32 : i32, i32
  }
  func.func @transform_1(%arg0: i32) -> (i32, i32) {
    %c0_i32 = arith.constant 0 : i32
    %c0_i32_0 = arith.constant 0 : i32
    return %arg0, %c0_i32 : i32, i32
  }
  func.func @transform_2(%arg0: i32) -> (i32, i32) {
    %c0_i32 = arith.constant 0 : i32
    %c0_i32_0 = arith.constant 0 : i32
    %c0_i32_1 = arith.constant 0 : i32
    return %c0_i32, %c0_i32_0 : i32, i32
  }
  func.func @transform_3(%arg0: i32) -> (i32, i32) {
    %c0_i32 = arith.constant 0 : i32
    %c0_i32_0 = arith.constant 0 : i32
    %c0_i32_1 = arith.constant 0 : i32
    return %c0_i32, %c0_i32_0 : i32, i32
  }
  func.func @transform_4(%arg0: i32) -> (i32, i32) {
    %c0_i32 = arith.constant 0 : i32
    %c0_i32_0 = arith.constant 0 : i32
    return %arg0, %c0_i32 : i32, i32
  }
}

module attributes {stable_mosaic.version = 11 : i64} {
  func.func @_score_kernel(%arg0: i32, %arg1: memref<2xf32, #tpu.memory_space<smem>>, %arg2: memref<1x8x32xbf16, #tpu.memory_space<vmem>>, %arg3: memref<96x32xbf16, #tpu.memory_space<vmem>>, %arg4: memref<1x1x6xf32, #tpu.memory_space<vmem>>) attributes {dimension_semantics = [#tpu.dimension_semantics<parallel>], iteration_bounds = array<i64: 2>, scalar_prefetch = 0 : i64, scratch_operands = 0 : i64, tpu.core_type = #tpu.core_type<tc>, window_params = [{transform_indices = @transform_0, window_bounds = array<i64: 2>}, {transform_indices = @transform_1, window_bounds = array<i64: 1, 8, 32>}, {pipeline_mode = #tpu.pipeline_mode<synchronous>, transform_indices = @transform_2, window_bounds = array<i64: 96, 32>}, {transform_indices = @transform_3, window_bounds = array<i64: 1, 1, 6>}]} {
    %c0 = arith.constant 0 : index
    %c0_0 = arith.constant 0 : index
    %c0_1 = arith.constant 0 : index
    %0 = vector.load %arg2[%c0, %c0_0, %c0_1] : memref<1x8x32xbf16, #tpu.memory_space<vmem>>, vector<1x8x32xbf16>
    %1 = vector.shape_cast %0 : vector<1x8x32xbf16> to vector<8x32xbf16>
    %c0_2 = arith.constant 0 : index
    %c0_3 = arith.constant 0 : index
    %2 = vector.load %arg3[%c0_2, %c0_3] : memref<96x32xbf16, #tpu.memory_space<vmem>>, vector<96x32xbf16>
    "tpu.trace_start"() <{level = 10 : i32, message = "qd,kd->qk"}> : () -> ()
    %cst = arith.constant dense<0.000000e+00> : vector<8x96xf32>
    %3 = tpu.matmul %1, %2, %cst {dimension_numbers = #tpu.dot_dimension_numbers<[1], [1], [0], [0], [0, 0, 1, 0], [], []>} : vector<8x32xbf16>, vector<96x32xbf16>, vector<8x96xf32> -> vector<8x96xf32>
    "tpu.trace_stop"() : () -> ()
    %4 = vector.extract_strided_slice %3 {offsets = [0, 0], sizes = [8, 16], strides = [1, 1]} : vector<8x96xf32> to vector<8x16xf32>
    %cst_4 = arith.constant dense<0xFF800000> : vector<8xf32>
    %5 = vector.multi_reduction <maximumf>, %4, %cst_4 [1] : vector<8x16xf32> to vector<8xf32>
    %6 = vector.shape_cast %5 : vector<8xf32> to vector<8x1xf32>
    %7 = vector.extract_strided_slice %3 {offsets = [0, 16], sizes = [8, 16], strides = [1, 1]} : vector<8x96xf32> to vector<8x16xf32>
    %cst_5 = arith.constant dense<0xFF800000> : vector<8xf32>
    %8 = vector.multi_reduction <maximumf>, %7, %cst_5 [1] : vector<8x16xf32> to vector<8xf32>
    %9 = vector.shape_cast %8 : vector<8xf32> to vector<8x1xf32>
    %10 = vector.extract_strided_slice %3 {offsets = [0, 32], sizes = [8, 16], strides = [1, 1]} : vector<8x96xf32> to vector<8x16xf32>
    %cst_6 = arith.constant dense<0xFF800000> : vector<8xf32>
    %11 = vector.multi_reduction <maximumf>, %10, %cst_6 [1] : vector<8x16xf32> to vector<8xf32>
    %12 = vector.shape_cast %11 : vector<8xf32> to vector<8x1xf32>
    %13 = vector.extract_strided_slice %3 {offsets = [0, 48], sizes = [8, 16], strides = [1, 1]} : vector<8x96xf32> to vector<8x16xf32>
    %cst_7 = arith.constant dense<0xFF800000> : vector<8xf32>
    %14 = vector.multi_reduction <maximumf>, %13, %cst_7 [1] : vector<8x16xf32> to vector<8xf32>
    %15 = vector.shape_cast %14 : vector<8xf32> to vector<8x1xf32>
    %16 = vector.extract_strided_slice %3 {offsets = [0, 64], sizes = [8, 16], strides = [1, 1]} : vector<8x96xf32> to vector<8x16xf32>
    %cst_8 = arith.constant dense<0xFF800000> : vector<8xf32>
    %17 = vector.multi_reduction <maximumf>, %16, %cst_8 [1] : vector<8x16xf32> to vector<8xf32>
    %18 = vector.shape_cast %17 : vector<8xf32> to vector<8x1xf32>
    %19 = vector.extract_strided_slice %3 {offsets = [0, 80], sizes = [8, 16], strides = [1, 1]} : vector<8x96xf32> to vector<8x16xf32>
    %cst_9 = arith.constant dense<0xFF800000> : vector<8xf32>
    %20 = vector.multi_reduction <maximumf>, %19, %cst_9 [1] : vector<8x16xf32> to vector<8xf32>
    %21 = vector.shape_cast %20 : vector<8xf32> to vector<8x1xf32>
    %22 = tpu.concatenate %6, %9, %12, %15, %18, %21 in 1 : vector<8x1xf32>, vector<8x1xf32>, vector<8x1xf32>, vector<8x1xf32>, vector<8x1xf32>, vector<8x1xf32> -> vector<8x6xf32>
    %cst_10 = arith.constant dense<0.000000e+00> : vector<6xf32>
    %23 = vector.multi_reduction <add>, %22, %cst_10 [0] : vector<8x6xf32> to vector<6xf32>
    %24 = vector.shape_cast %23 : vector<6xf32> to vector<1x6xf32>
    %25 = arith.index_cast %arg0 : i32 to index
    %26 = memref.load %arg1[%25] : memref<2xf32, #tpu.memory_space<smem>>
    %27 = vector.broadcast %26 : f32 to vector<1x6xf32>
    %28 = arith.mulf %24, %27 : vector<1x6xf32>
    %c0_11 = arith.constant 0 : index
    %c0_12 = arith.constant 0 : index
    %c0_13 = arith.constant 0 : index
    %29 = vector.load %arg4[%c0_11, %c0_12, %c0_13] : memref<1x1x6xf32, #tpu.memory_space<vmem>>, vector<1x1x6xf32>
    %30 = vector.shape_cast %29 : vector<1x1x6xf32> to vector<1x6xf32>
    %31 = vector.shape_cast %28 : vector<1x6xf32> to vector<1x1x6xf32>
    tpu.vector_store %arg4[%c0_11, %c0_12, %c0_13], %31 {strides = array<i32>} : memref<1x1x6xf32, #tpu.memory_space<vmem>>, vector<1x1x6xf32>,
    return
  }
  func.func @transform_0(%arg0: i32) -> i32 {
    %c0_i32 = arith.constant 0 : i32
    %c0_i32_0 = arith.constant 0 : i32
    return %c0_i32 : i32
  }
  func.func @transform_1(%arg0: i32) -> (i32, i32, i32) {
    %c0_i32 = arith.constant 0 : i32
    %c0_i32_0 = arith.constant 0 : i32
    %c0_i32_1 = arith.constant 0 : i32
    return %arg0, %c0_i32, %c0_i32_0 : i32, i32, i32
  }
  func.func @transform_2(%arg0: i32) -> (i32, i32) {
    %c0_i32 = arith.constant 0 : i32
    %c0_i32_0 = arith.constant 0 : i32
    %c0_i32_1 = arith.constant 0 : i32
    return %c0_i32, %c0_i32_0 : i32, i32
  }
  func.func @transform_3(%arg0: i32) -> (i32, i32, i32) {
    %c0_i32 = arith.constant 0 : i32
    %c0_i32_0 = arith.constant 0 : i32
    %c0_i32_1 = arith.constant 0 : i32
    return %arg0, %c0_i32, %c0_i32_0 : i32, i32, i32
  }
}

</mosaic_0001>

<llo_original>
// kernel: colbert_forward.2
$region0: #{colbert_forward.2}
  #allocation0 [shape = 'u32[]', space=smem, size = 0x4, offset = 0x4, fixed_abs, tag = 'smem constant byte address 0x4 - core index']
  #allocation1 [shape = 'u32[144,128]{1,0:T(1,128)}', space=vmem, size = 0x12000, scoped, tag = 'internal scratch']
  %s0 = inlined_call_operand.vmem [shape: bf16[128,32], index: 0, kind: input, shape index: {}]
  %s1 = inlined_call_operand.vmem [shape: f32[128,1], index: 1, kind: input, shape index: {}]
  %s2 = inlined_call_operand.vmem [shape: bf16[32,32], index: 2, kind: input, shape index: {}]
  %s3 = inlined_call_operand.vmem [shape: f32[1,32], index: 3, kind: input, shape index: {}]
  %s4 = inlined_call_operand.vmem [shape: bf16[128,32], index: 4, kind: output, shape index: {}]
  %s5 = sld [smem:[#allocation0]]
  $region49: #{colbert_forward.2} parent=0
    _
  %s7 = ssub.s32 1, %s5
  %s8 = scalar_select 0, %s7, %s5
  loop: start=0, step=1, limit=4
  $region2: #{colbert_forward.2} parent=0 // loop_pre_header
    _
  $region3: #{colbert_forward.2} parent=0 // loop_header
    %s10 = sphi 0, %s14
    %p11 = scmp.ge.s32.totalorder %s10, 4
    %s20 = sphi 0, %s22
    %s23 = sphi 0, %s20
    %s24 = sphi 0, %s23
    %s40 = sphi 0, %s24
    %s46 = sphi 0, %s48
    %s49 = sphi 0, %s46
    %s50 = sphi 0, %s49
    %s66 = sphi 0, %s50
    %s70 = sphi 0, %s70
    %s72 = sphi 0, %s70
    %s73 = sphi 0, %s72
    %s87 = sphi 0, %s73
    %s91 = sphi 0, %s91
    %s93 = sphi 0, %s91
    %s94 = sphi 0, %s93
    %s108 = sphi 0, %s94
    %s114 = sphi 0, %s116
    %s117 = sphi 0, %s114
    %s118 = sphi 0, %s117
    %s134 = sphi 0, %s118
  $region4: #{colbert_forward.2} parent=0 // loop_header_branch
    %13 = sbr.rel (%p11) target = $region8
  $region5: #{colbert_forward.2} parent=0 // loop_body
    %s15 = ssub.s32 %s10, 1
    %s16 = ssub.s32 %s10, 2
    %s17 = sadd.s32 %s10, 1
    %s18 = ssub.s32 %s10, %s17
    %p19 = scmp.eq.s32.totalorder %s18, 0
    %s21 = sadd.s32 %s20, 1
    %s22 = scalar_select %p19, %s20, %s21
    %p25 = pneg %p19
    %p26 = scmp.eq.s32.totalorder %s10, 1
    %p27 = por %p25, %p26
    %p28 = scmp.ne.s32.totalorder %s20, %s23
    %p29 = scmp.eq.s32.totalorder %s10, 0
    %p30 = por %p28, %p29
    %p31 = scmp.ne.s32.totalorder %s20, %s23
    %p32 = scmp.eq.s32.totalorder %s15, 1
    %p33 = por %p31, %p32
    %p34 = scmp.ne.s32.totalorder %s23, %s24
    %p35 = scmp.eq.s32.totalorder %s15, 0
    %p36 = por %p34, %p35
    %p37 = scmp.ne.s32.totalorder %s23, %s24
    %p38 = scmp.eq.s32.totalorder %s16, 1
    %p39 = por %p37, %p38
    %p41 = scmp.ne.s32.totalorder %s24, %s40
    %p42 = scmp.eq.s32.totalorder %s16, 0
    %p43 = por %p41, %p42
    %s44 = ssub.s32 %s10, %s17
    %p45 = scmp.eq.s32.totalorder %s44, 0
    %s47 = sadd.s32 %s46, 1
    %s48 = scalar_select %p45, %s46, %s47
    %p51 = pneg %p45
    %p52 = scmp.eq.s32.totalorder %s10, 1
    %p53 = por %p51, %p52
    %p54 = scmp.ne.s32.totalorder %s46, %s49
    %p55 = scmp.eq.s32.totalorder %s10, 0
    %p56 = por %p54, %p55
    %p57 = scmp.ne.s32.totalorder %s46, %s49
    %p58 = scmp.eq.s32.totalorder %s15, 1
    %p59 = por %p57, %p58
    %p60 = scmp.ne.s32.totalorder %s49, %s50
    %p61 = scmp.eq.s32.totalorder %s15, 0
    %p62 = por %p60, %p61
    %p63 = scmp.ne.s32.totalorder %s49, %s50
    %p64 = scmp.eq.s32.totalorder %s16, 1
    %p65 = por %p63, %p64
    %p67 = scmp.ne.s32.totalorder %s50, %s66
    %p68 = scmp.eq.s32.totalorder %s16, 0
    %p69 = por %p67, %p68
    %s71 = sadd.s32 %s70, 1
    %p74 = scmp.eq.s32.totalorder %s10, 1
    %p75 = scmp.ne.s32.totalorder %s70, %s72
    %p76 = scmp.eq.s32.totalorder %s10, 0
    %p77 = por %p75, %p76
    %p78 = scmp.ne.s32.totalorder %s70, %s72
    %p79 = scmp.eq.s32.totalorder %s15, 1
    %p80 = por %p78, %p79
    %p81 = scmp.ne.s32.totalorder %s72, %s73
    %p82 = scmp.eq.s32.totalorder %s15, 0
    %p83 = por %p81, %p82
    %p84 = scmp.ne.s32.totalorder %s72, %s73
    %p85 = scmp.eq.s32.totalorder %s16, 1
    %p86 = por %p84, %p85
    %p88 = scmp.ne.s32.totalorder %s73, %s87
    %p89 = scmp.eq.s32.totalorder %s16, 0
    %p90 = por %p88, %p89
    %s92 = sadd.s32 %s91, 1
    %p95 = scmp.eq.s32.totalorder %s10, 1
    %p96 = scmp.ne.s32.totalorder %s91, %s93
    %p97 = scmp.eq.s32.totalorder %s10, 0
    %p98 = por %p96, %p97
    %p99 = scmp.ne.s32.totalorder %s91, %s93
    %p100 = scmp.eq.s32.totalorder %s15, 1
    %p101 = por %p99, %p100
    %p102 = scmp.ne.s32.totalorder %s93, %s94
    %p103 = scmp.eq.s32.totalorder %s15, 0
    %p104 = por %p102, %p103
    %p105 = scmp.ne.s32.totalorder %s93, %s94
    %p106 = scmp.eq.s32.totalorder %s16, 1
    %p107 = por %p105, %p106
    %p109 = scmp.ne.s32.totalorder %s94, %s108
    %p110 = scmp.eq.s32.totalorder %s16, 0
    %p111 = por %p109, %p110
    %s112 = ssub.s32 %s10, %s17
    %p113 = scmp.eq.s32.totalorder %s112, 0
    %s115 = sadd.s32 %s114, 1
    %s116 = scalar_select %p113, %s114, %s115
    %p119 = pneg %p113
    %p120 = scmp.eq.s32.totalorder %s10, 1
    %p121 = por %p119, %p120
    %p122 = scmp.ne.s32.totalorder %s114, %s117
    %p123 = scmp.eq.s32.totalorder %s10, 0
    %p124 = por %p122, %p123
    %p125 = scmp.ne.s32.totalorder %s114, %s117
    %p126 = scmp.eq.s32.totalorder %s15, 1
    %p127 = por %p125, %p126
    %p128 = scmp.ne.s32.totalorder %s117, %s118
    %p129 = scmp.eq.s32.totalorder %s15, 0
    %p130 = por %p128, %p129
    %p131 = scmp.ne.s32.totalorder %s117, %s118
    %p132 = scmp.eq.s32.totalorder %s16, 1
    %p133 = por %p131, %p132
    %p135 = scmp.ne.s32.totalorder %s118, %s134
    %p136 = scmp.eq.s32.totalorder %s16, 0
    %p137 = por %p135, %p136
    %p138 = scmp.le.s32.totalorder 1, %s10
    %p139 = scmp.lt.s32.totalorder %s10, 3
    %p140 = pnand %p138, %p139
    %p141 = pneg %p140
    // Predicated region
    $region9: #{colbert_forward.2} parent=5 // pred_check
      _
    $region10: #{colbert_forward.2} parent=5 // pred_check_branch
      %143 = sbr.rel (%p140) target = $region12
    $region11: #{colbert_forward.2} parent=5 // pred_region
      %s144 = ssub.s32 %s10, 1
      // Predicated region
      $region13: #{colbert_forward.2} parent=11 // pred_check
        %p145 = pneg %p83
      $region14: #{colbert_forward.2} parent=11 // pred_check_branch
        %147 = sbr.rel (%p145) target = $region16
      $region15: #{colbert_forward.2} parent=11 // pred_region
        _
      $region16: #{colbert_forward.2} parent=11 // pred_fallthru
        _
      // Predicated region
      $region17: #{colbert_forward.2} parent=11 // pred_check
        %p148 = pneg %p104
      $region18: #{colbert_forward.2} parent=11 // pred_check_branch
        %150 = sbr.rel (%p148) target = $region20
      $region19: #{colbert_forward.2} parent=11 // pred_region
        _
      $region20: #{colbert_forward.2} parent=11 // pred_fallthru
        _
    $region12: #{colbert_forward.2} parent=5 // pred_fallthru
      _
    %p151 = scmp.lt.s32.totalorder %s10, 2
    // Predicated region
    $region21: #{colbert_forward.2} parent=5 // pred_check
      %p152 = pneg %p151
    $region22: #{colbert_forward.2} parent=5 // pred_check_branch
      %154 = sbr.rel (%p152) target = $region24
    $region23: #{colbert_forward.2} parent=5 // pred_region
      // Predicated region
      $region25: #{colbert_forward.2} parent=23 // pred_check
        %p155 = pneg %p30
      $region26: #{colbert_forward.2} parent=23 // pred_check_branch
        %157 = sbr.rel (%p155) target = $region28
      $region27: #{colbert_forward.2} parent=23 // pred_region
        %s158 = smul.u32 8, %s10
        %p159 = scmp.lt.s32.totalorder %s158, 15
        %s160 = scalar_select %p159, %s158, 15
        %s161 = smul.addr %s160, 4
        %s162 = scalar_lea.vmem %s0, %s161
        %s163 = smul.u32 8, %s10
      $region28: #{colbert_forward.2} parent=23 // pred_fallthru
        _
      // Predicated region
      $region29: #{colbert_forward.2} parent=23 // pred_check
        %p164 = pneg %p56
      $region30: #{colbert_forward.2} parent=23 // pred_check_branch
        %166 = sbr.rel (%p164) target = $region32
      $region31: #{colbert_forward.2} parent=23 // pred_region
        %s167 = smul.u32 8, %s10
        %p168 = scmp.lt.s32.totalorder %s167, 15
        %s169 = scalar_select %p168, %s167, 15
        %s170 = smul.addr %s169, 8
        %s171 = scalar_lea.vmem %s1, %s170
        %s172 = smul.u32 8, %s10
      $region32: #{colbert_forward.2} parent=23 // pred_fallthru
        _
    $region24: #{colbert_forward.2} parent=5 // pred_fallthru
      _
    %p173 = scmp.le.s32.totalorder 1, %s10
    %p174 = scmp.lt.s32.totalorder %s10, 3
    %p175 = pnand %p173, %p174
    %p176 = pneg %p175
    // Predicated region
    $region33: #{colbert_forward.2} parent=5 // pred_check
      _
    $region34: #{colbert_forward.2} parent=5 // pred_check_branch
      %178 = sbr.rel (%p175) target = $region36
    $region35: #{colbert_forward.2} parent=5 // pred_region
      %s179 = ssub.s32 %s10, 1
      %s180 = smul.u32 8, %s15
      %p181 = scmp.lt.s32.totalorder %s180, 15
      %s182 = scalar_select %p181, %s180, 15
      %s183 = smul.addr %s182, 4
      %s184 = scalar_lea.vmem %s0, %s183
      %p185 = pneg %p36
      %p186 = pneg %p33
      %s187 = smul.u32 8, %s15
      %p188 = scmp.lt.s32.totalorder %s187, 15
      %s189 = scalar_select %p188, %s187, 15
      %s190 = smul.addr %s189, 8
      %s191 = scalar_lea.vmem %s1, %s190
      %p192 = pneg %p62
      %p193 = pneg %p59
      %p194 = pneg %p83
      %p195 = pneg %p80
      %p196 = pneg %p104
      %p197 = pneg %p101
      %p198 = pneg %p130
      %p199 = pneg %p127
      %s200 = smul.u32 8, %s15
      %p201 = scmp.lt.s32.totalorder %s200, 15
      %s202 = scalar_select %p201, %s200, 15
      %s203 = smul.addr %s202, 4
      %s204 = scalar_lea.vmem %s4, %s203
      %s205 = smul.u32 8, %s15
      %p206 = scmp.lt.s32.totalorder %s205, 15
      %s207 = scalar_select %p206, %s205, 15
      %s208 = smul.addr %s207, 4
      %s209 = scalar_lea.vmem %s0, %s208
      %s210 = smul.u32 8, %s15
      %s211 = smul.u32 8, %s15
      %p212 = scmp.lt.s32.totalorder %s211, 15
      %s213 = scalar_select %p212, %s211, 15
      %s214 = smul.addr %s213, 8
      %s215 = scalar_lea.vmem %s1, %s214
      %s216 = smul.u32 8, %s15
      %s217 = smul.u32 8, %s15
      %p218 = scmp.lt.s32.totalorder %s217, 15
      %s219 = scalar_select %p218, %s217, 15
      %s220 = smul.addr %s219, 4
      %s221 = scalar_lea.vmem %s4, %s220
      %s222 = smul.u32 8, %s15
      %v224 = vld [vmem:[%s209] sm:$0xf]
      %v225 = vld [vmem:[%s209 + $0x4] sm:$0xf]
      %v226 = vld [vmem:[%s209 + $0x8] sm:$0xf]
      %v227 = vld [vmem:[%s209 + $0xc] sm:$0xf]
      %v228 = vld [vmem:[%s209 + $0x10] sm:$0xf]
      %v229 = vld [vmem:[%s209 + $0x14] sm:$0xf]
      %v230 = vld [vmem:[%s209 + $0x18] sm:$0xf]
      %v231 = vld [vmem:[%s209 + $0x1c] sm:$0xf]
      %v232 = vld [vmem:[%s2] sm:$0xf]
      %v233 = vld [vmem:[%s2 + $0x4] sm:$0xf]
      %v234 = vld [vmem:[%s2 + $0x8] sm:$0xf]
      %v235 = vld [vmem:[%s2 + $0xc] sm:$0xf]
      %v236 = vld [vmem:[%s3] sm:$0x1]
      %v238 = vlaneseq
      %v239 = vshrl.u32 %v238, 7
      %v240 = vsub.s32 0, %v239
      %v241 = vrot.slane %v236, %v240
      %v251 = vunpack.c.l.b16 %v224
      %v252 = vunpack.c.l.b16 %v225
      %v253 = vunpack.c.l.b16 %v226
      %v254 = vunpack.c.l.b16 %v227
      %v255 = vunpack.c.l.b16 %v228
      %v256 = vunpack.c.l.b16 %v229
      %v257 = vunpack.c.l.b16 %v230
      %v258 = vunpack.c.l.b16 %v231
      %v259 = vpack.c.b16 %v252, %v251
      %v260 = vpack.c.b16 %v254, %v253
      %v261 = vpack.c.b16 %v256, %v255
      %v262 = vpack.c.b16 %v258, %v257
      %v267 = vunpack.c.l.b16 %v232
      %v268 = vunpack.c.l.b16 %v233
      %v269 = vunpack.c.l.b16 %v234
      %v270 = vunpack.c.l.b16 %v235
      %v271 = vpack.c.b16 %v268, %v267
      %v272 = vpack.c.b16 %v270, %v269
      %vm275 = vcmask 261120
      %v277 = vsel %vm275, %v259, 0
      %v280 = vsel %vm275, %v260, 0
      %v283 = vsel %vm275, %v261, 0
      %v286 = vsel %vm275, %v262, 0
      %288 = vmatprep.subr.bf16.mxu0 0
      %289 = vmatpush1.bf16.msra.mxu0 %v271
      %290 = vmatprep.subr.bf16.mxu0 0
      %291 = vmatpush1.bf16.msra.mxu0 %v272
      %292 = vmatprep.subr.bf16.mxu0 0
      %293 = vmatpush1.bf16.msra.mxu0 0
      %294 = vmatprep.subr.bf16.mxu0 0
      %295 = vmatpush1.bf16.msra.mxu0 0
      %296 = vmatprep.subr.bf16.mxu0 0
      %297 = vmatpush1.bf16.msra.mxu0 0
      %298 = vmatprep.subr.bf16.mxu0 0
      %299 = vmatpush1.bf16.msra.mxu0 0
      %300 = vmatprep.subr.bf16.mxu0 0
      %301 = vmatpush1.bf16.msra.mxu0 0
      %302 = vmatprep.subr.bf16.mxu0 0
      %303 = vmatpush1.bf16.msra.mxu0 0
      %304 = vmatprep.subr.bf16.mxu0 0
      %305 = vmatpush1.bf16.msra.mxu0 0
      %306 = vmatprep.subr.bf16.mxu0 0
      %307 = vmatpush1.bf16.msra.mxu0 0
      %308 = vmatprep.subr.bf16.mxu0 0
      %309 = vmatpush1.bf16.msra.mxu0 0
      %310 = vmatprep.subr.bf16.mxu0 0
      %311 = vmatpush1.bf16.msra.mxu0 0
      %312 = vmatprep.subr.bf16.mxu0 0
      %313 = vmatpush1.bf16.msra.mxu0 0
      %314 = vmatprep.subr.bf16.mxu0 0
      %315 = vmatpush1.bf16.msra.mxu0 0
      %316 = vmatprep.subr.bf16.mxu0 0
      %317 = vmatpush1.bf16.msra.mxu0 0
      %318 = vmatprep.subr.bf16.mxu0 0
      %319 = vmatpush1.bf16.msra.mxu0 0
      %320 = vmatprep.mubr.bf16.mxu0 0
      %321 = vmatmul.mubr.bf16.gmra.mrb[0].mxu0 %v277
      %v322 = vpop.f32.mrb[0].mxu0
      %v323 = vadd.f32 %v241, %v322
      %v324 = vpop.f32.mrb[0].mxu0
      %v325 = vpop.f32.mrb[0].mxu0
      %v326 = vadd.f32 %v241, %v325
      %v327 = vpop.f32.mrb[0].mxu0
      %328 = vmatprep.mubr.bf16.mxu0 0
      %329 = vmatmul.mubr.bf16.gmra.mrb[0].mxu0 %v280
      %v330 = vpop.f32.mrb[0].mxu0
      %v331 = vadd.f32 %v241, %v330
      %v332 = vpop.f32.mrb[0].mxu0
      %v333 = vpop.f32.mrb[0].mxu0
      %v334 = vadd.f32 %v241, %v333
      %v335 = vpop.f32.mrb[0].mxu0
      %336 = vmatprep.mubr.bf16.mxu0 0
      %337 = vmatmul.mubr.bf16.gmra.mrb[0].mxu0 %v283
      %v338 = vpop.f32.mrb[0].mxu0
      %v339 = vadd.f32 %v241, %v338
      %v340 = vpop.f32.mrb[0].mxu0
      %v341 = vpop.f32.mrb[0].mxu0
      %v342 = vadd.f32 %v241, %v341
      %v343 = vpop.f32.mrb[0].mxu0
      %344 = vmatprep.mubr.bf16.mxu0 0
      %345 = vmatmul.mubr.bf16.gmra.mrb[0].mxu0 %v286
      %v346 = vpop.f32.mrb[0].mxu0
      %v347 = vadd.f32 %v241, %v346
      %v348 = vpop.f32.mrb[0].mxu0
      %v349 = vpop.f32.mrb[0].mxu0
      %v350 = vadd.f32 %v241, %v349
      %v351 = vpop.f32.mrb[0].mxu0
      %352 = vdwg.mxu0
      %v353 = vld [vmem:[%s215] sm:$0xff]
      %v354 = vld [vmem:[%s215 + $0x8] sm:$0xff]
      %v355 = vld [vmem:[%s215 + $0x10] sm:$0xff]
      %v356 = vld [vmem:[%s215 + $0x18] sm:$0xff]
      %v357 = vld [vmem:[%s215 + $0x20] sm:$0xff]
      %v358 = vld [vmem:[%s215 + $0x28] sm:$0xff]
      %v359 = vld [vmem:[%s215 + $0x30] sm:$0xff]
      %v360 = vld [vmem:[%s215 + $0x38] sm:$0xff]
      %362 = vset.pattern.permute.xlu0 0
      %363 = vperm.xlu0 %362, %v353
      %v364 = vpop.permute.xlu0 %363
      %367 = vset.pattern.permute.xlu0 0
      %368 = vperm.xlu0 %367, %v354
      %v369 = vpop.permute.xlu0 %368
      %372 = vset.pattern.permute.xlu0 0
      %373 = vperm.xlu0 %372, %v355
      %v374 = vpop.permute.xlu0 %373
      %377 = vset.pattern.permute.xlu0 0
      %378 = vperm.xlu0 %377, %v356
      %v379 = vpop.permute.xlu0 %378
      %382 = vset.pattern.permute.xlu0 0
      %383 = vperm.xlu0 %382, %v357
      %v384 = vpop.permute.xlu0 %383
      %387 = vset.pattern.permute.xlu0 0
      %388 = vperm.xlu0 %387, %v358
      %v389 = vpop.permute.xlu0 %388
      %392 = vset.pattern.permute.xlu0 0
      %393 = vperm.xlu0 %392, %v359
      %v394 = vpop.permute.xlu0 %393
      %397 = vset.pattern.permute.xlu0 0
      %398 = vperm.xlu0 %397, %v360
      %v399 = vpop.permute.xlu0 %398
      %v401 = vmul.f32 %v323, %v364
      %v402 = vmul.f32 %v326, %v369
      %v403 = vmul.f32 %v331, %v374
      %v404 = vmul.f32 %v334, %v379
      %v405 = vmul.f32 %v339, %v384
      %v406 = vmul.f32 %v342, %v389
      %v407 = vmul.f32 %v347, %v394
      %v408 = vmul.f32 %v350, %v399
      %v409 = vmul.f32 %v401, %v401
      %v410 = vmul.f32 %v402, %v402
      %v411 = vmul.f32 %v403, %v403
      %v412 = vmul.f32 %v404, %v404
      %v413 = vmul.f32 %v405, %v405
      %v414 = vmul.f32 %v406, %v406
      %v415 = vmul.f32 %v407, %v407
      %v416 = vmul.f32 %v408, %v408
      %v417 = vsel %vm275, %v409, 0.0
      %418 = vadd.xlane.f32.xlu0 %v417
      %v419 = vpop.xlane.xlu0 %418
      %v420 = vsel %vm275, %v410, 0.0
      %421 = vadd.xlane.f32.xlu0 %v420
      %v422 = vpop.xlane.xlu0 %421
      %v423 = vsel %vm275, %v411, 0.0
      %424 = vadd.xlane.f32.xlu0 %v423
      %v425 = vpop.xlane.xlu0 %424
      %v426 = vsel %vm275, %v412, 0.0
      %427 = vadd.xlane.f32.xlu0 %v426
      %v428 = vpop.xlane.xlu0 %427
      %v429 = vsel %vm275, %v413, 0.0
      %430 = vadd.xlane.f32.xlu0 %v429
      %v431 = vpop.xlane.xlu0 %430
      %v432 = vsel %vm275, %v414, 0.0
      %433 = vadd.xlane.f32.xlu0 %v432
      %v434 = vpop.xlane.xlu0 %433
      %v435 = vsel %vm275, %v415, 0.0
      %436 = vadd.xlane.f32.xlu0 %v435
      %v437 = vpop.xlane.xlu0 %436
      %v438 = vsel %vm275, %v416, 0.0
      %439 = vadd.xlane.f32.xlu0 %v438
      %v440 = vpop.xlane.xlu0 %439
      %v441 = vmax.f32 %v419, 1e-24
      %v442 = vmax.f32 %v422, 1e-24
      %v443 = vmax.f32 %v425, 1e-24
      %v444 = vmax.f32 %v428, 1e-24
      %v445 = vmax.f32 %v431, 1e-24
      %v446 = vmax.f32 %v434, 1e-24
      %v447 = vmax.f32 %v437, 1e-24
      %v448 = vmax.f32 %v440, 1e-24
      %v449 = vrsqrt.pop %v441
      %v450 = vrsqrt.pop %v442
      %v451 = vrsqrt.pop %v443
      %v452 = vrsqrt.pop %v444
      %v453 = vrsqrt.pop %v445
      %v454 = vrsqrt.pop %v446
      %v455 = vrsqrt.pop %v447
      %v456 = vrsqrt.pop %v448
      %v457 = vmul.f32 %v401, %v449
      %v458 = vmul.f32 %v402, %v450
      %v459 = vmul.f32 %v403, %v451
      %v460 = vmul.f32 %v404, %v452
      %v461 = vmul.f32 %v405, %v453
      %v462 = vmul.f32 %v406, %v454
      %v463 = vmul.f32 %v407, %v455
      %v464 = vmul.f32 %v408, %v456
      %v465 = vpack.c.bf16 %v458, %v457
      %v466 = vpack.c.bf16 %v460, %v459
      %v467 = vpack.c.bf16 %v462, %v461
      %v468 = vpack.c.bf16 %v464, %v463
      %v473 = vunpack.c.l.b16 %v465
      %v474 = vunpack.c.h.b16 %v465
      %v475 = vunpack.c.l.b16 %v466
      %v476 = vunpack.c.h.b16 %v466
      %v477 = vunpack.c.l.b16 %v467
      %v478 = vunpack.c.h.b16 %v467
      %v479 = vunpack.c.l.b16 %v468
      %v480 = vunpack.c.h.b16 %v468
      %v481 = vpack.c.b16 %v473, %v473
      %v482 = vpack.c.b16 %v474, %v474
      %v483 = vpack.c.b16 %v475, %v475
      %v484 = vpack.c.b16 %v476, %v476
      %v485 = vpack.c.b16 %v477, %v477
      %v486 = vpack.c.b16 %v478, %v478
      %v487 = vpack.c.b16 %v479, %v479
      %v488 = vpack.c.b16 %v480, %v480
      %vm497 = vcmask 257024
      %498 = vst.msk [vmem:[%s221] sm:$0xf] %vm497, %v481
      %499 = vst.msk [vmem:[%s221 + $0x4] sm:$0xf] %vm497, %v482
      %500 = vst.msk [vmem:[%s221 + $0x8] sm:$0xf] %vm497, %v483
      %501 = vst.msk [vmem:[%s221 + $0xc] sm:$0xf] %vm497, %v484
      %502 = vst.msk [vmem:[%s221 + $0x10] sm:$0xf] %vm497, %v485
      %503 = vst.msk [vmem:[%s221 + $0x14] sm:$0xf] %vm497, %v486
      %504 = vst.msk [vmem:[%s221 + $0x18] sm:$0xf] %vm497, %v487
      %505 = vst.msk [vmem:[%s221 + $0x1c] sm:$0xf] %vm497, %v488
      %s506 = smul.u32 8, %s15
      %p507 = scmp.lt.s32.totalorder %s506, 15
      %s508 = scalar_select %p507, %s506, 15
      %s509 = smul.addr %s508, 4
      %s510 = scalar_lea.vmem %s4, %s509
      // Predicated region
      $region37: #{colbert_forward.2} parent=35 // pred_check
        %p511 = pneg %p127
      $region38: #{colbert_forward.2} parent=35 // pred_check_branch
        %513 = sbr.rel (%p511) target = $region40
      $region39: #{colbert_forward.2} parent=35 // pred_region
        %s514 = smul.u32 8, %s15
      $region40: #{colbert_forward.2} parent=35 // pred_fallthru
        _
    $region36: #{colbert_forward.2} parent=5 // pred_fallthru
      _
    %p515 = scmp.le.s32.totalorder 2, %s10
    // Predicated region
    $region41: #{colbert_forward.2} parent=5 // pred_check
      %p516 = pneg %p515
    $region42: #{colbert_forward.2} parent=5 // pred_check_branch
      %518 = sbr.rel (%p516) target = $region44
    $region43: #{colbert_forward.2} parent=5 // pred_region
      %s519 = ssub.s32 %s10, 2
      // Predicated region
      $region45: #{colbert_forward.2} parent=43 // pred_check
        %p520 = pneg %p133
      $region46: #{colbert_forward.2} parent=43 // pred_check_branch
        %522 = sbr.rel (%p520) target = $region48
      $region47: #{colbert_forward.2} parent=43 // pred_region
        %s523 = smul.u32 8, %s16
        %p524 = scmp.lt.s32.totalorder %s523, 15
        %s525 = scalar_select %p524, %s523, 15
        %s526 = smul.addr %s525, 4
        %s527 = scalar_lea.vmem %s4, %s526
      $region48: #{colbert_forward.2} parent=43 // pred_fallthru
        _
    $region44: #{colbert_forward.2} parent=5 // pred_fallthru
      _
  $region6: #{colbert_forward.2} parent=0 // loop_footer
    %s14 = sadd.s32 1, %s10
  $region7: #{colbert_forward.2} parent=0 // loop_footer_branch
    %9 = sbr.rel target = $region3
  $region8: #{colbert_forward.2} parent=0 // loop_exit
    _

// kernel: colbert_forward.3
$region0: #{colbert_forward.3}
  #allocation0 [shape = 'u32[]', space=smem, size = 0x4, offset = 0x4, fixed_abs, tag = 'smem constant byte address 0x4 - core index']
  #allocation1 [shape = 'u32[144,128]{1,0:T(1,128)}', space=vmem, size = 0x12000, scoped, tag = 'internal scratch']
  %s0 = inlined_call_operand.vmem [shape: f32[2], index: 0, kind: input, shape index: {}]
  %s1 = inlined_call_operand.vmem [shape: bf16[2,8,32], index: 1, kind: input, shape index: {}]
  %s2 = inlined_call_operand.vmem [shape: bf16[96,32], index: 2, kind: input, shape index: {}]
  %s3 = inlined_call_operand.vmem [shape: f32[2,1,6], index: 3, kind: output, shape index: {}]
  %s4 = sld [smem:[#allocation0]]
  $region49: #{colbert_forward.3} parent=0
    _
  %s6 = ssub.s32 1, %s4
  %s7 = scalar_select 0, %s6, %s4
  $region1: #{colbert_forward.3} parent=0
    #allocation2 [shape = 'u8[512]{0}', space=smem, size = 0x200, scoped, tag = 'input window, operand 0, single buffered']
    #allocation3 [shape = 's32[2]{0}', space=sflag, size = 0x8, scoped, tag = 'scoped memory for colbert_forward.3']
    %8 = vsyncpa [#allocation3], 0
    loop: start=0, step=1, limit=4
    $region2: #{colbert_forward.3} parent=1 // loop_pre_header
      _
    $region3: #{colbert_forward.3} parent=1 // loop_header
      %s10 = sphi 0, %s14
      %p11 = scmp.ge.s32.totalorder %s10, 4
      %s18 = sphi 0, %s18
      %s20 = sphi 0, %s18
      %s21 = sphi 0, %s20
      %s35 = sphi 0, %s21
      %s41 = sphi 0, %s43
      %s44 = sphi 0, %s41
      %s45 = sphi 0, %s44
      %s61 = sphi 0, %s45
      %s65 = sphi 0, %s65
      %s67 = sphi 0, %s65
      %s68 = sphi 0, %s67
      %s82 = sphi 0, %s68
      %s88 = sphi 0, %s90
      %s91 = sphi 0, %s88
      %s92 = sphi 0, %s91
      %s108 = sphi 0, %s92
    $region4: #{colbert_forward.3} parent=1 // loop_header_branch
      %13 = sbr.rel (%p11) target = $region8
    $region5: #{colbert_forward.3} parent=1 // loop_body
      %s15 = ssub.s32 %s10, 1
      %s16 = ssub.s32 %s10, 2
      %s17 = sadd.s32 %s10, 1
      %s19 = sadd.s32 %s18, 1
      %p22 = scmp.eq.s32.totalorder %s10, 1
      %p23 = scmp.ne.s32.totalorder %s18, %s20
      %p24 = scmp.eq.s32.totalorder %s10, 0
      %p25 = por %p23, %p24
      %p26 = scmp.ne.s32.totalorder %s18, %s20
      %p27 = scmp.eq.s32.totalorder %s15, 1
      %p28 = por %p26, %p27
      %p29 = scmp.ne.s32.totalorder %s20, %s21
      %p30 = scmp.eq.s32.totalorder %s15, 0
      %p31 = por %p29, %p30
      %p32 = scmp.ne.s32.totalorder %s20, %s21
      %p33 = scmp.eq.s32.totalorder %s16, 1
      %p34 = por %p32, %p33
      %p36 = scmp.ne.s32.totalorder %s21, %s35
      %p37 = scmp.eq.s32.totalorder %s16, 0
      %p38 = por %p36, %p37
      %s39 = ssub.s32 %s10, %s17
      %p40 = scmp.eq.s32.totalorder %s39, 0
      %s42 = sadd.s32 %s41, 1
      %s43 = scalar_select %p40, %s41, %s42
      %p46 = pneg %p40
      %p47 = scmp.eq.s32.totalorder %s10, 1
      %p48 = por %p46, %p47
      %p49 = scmp.ne.s32.totalorder %s41, %s44
      %p50 = scmp.eq.s32.totalorder %s10, 0
      %p51 = por %p49, %p50
      %p52 = scmp.ne.s32.totalorder %s41, %s44
      %p53 = scmp.eq.s32.totalorder %s15, 1
      %p54 = por %p52, %p53
      %p55 = scmp.ne.s32.totalorder %s44, %s45
      %p56 = scmp.eq.s32.totalorder %s15, 0
      %p57 = por %p55, %p56
      %p58 = scmp.ne.s32.totalorder %s44, %s45
      %p59 = scmp.eq.s32.totalorder %s16, 1
      %p60 = por %p58, %p59
      %p62 = scmp.ne.s32.totalorder %s45, %s61
      %p63 = scmp.eq.s32.totalorder %s16, 0
      %p64 = por %p62, %p63
      %s66 = sadd.s32 %s65, 1
      %p69 = scmp.eq.s32.totalorder %s10, 1
      %p70 = scmp.ne.s32.totalorder %s65, %s67
      %p71 = scmp.eq.s32.totalorder %s10, 0
      %p72 = por %p70, %p71
      %p73 = scmp.ne.s32.totalorder %s65, %s67
      %p74 = scmp.eq.s32.totalorder %s15, 1
      %p75 = por %p73, %p74
      %p76 = scmp.ne.s32.totalorder %s67, %s68
      %p77 = scmp.eq.s32.totalorder %s15, 0
      %p78 = por %p76, %p77
      %p79 = scmp.ne.s32.totalorder %s67, %s68
      %p80 = scmp.eq.s32.totalorder %s16, 1
      %p81 = por %p79, %p80
      %p83 = scmp.ne.s32.totalorder %s68, %s82
      %p84 = scmp.eq.s32.totalorder %s16, 0
      %p85 = por %p83, %p84
      %s86 = ssub.s32 %s10, %s17
      %p87 = scmp.eq.s32.totalorder %s86, 0
      %s89 = sadd.s32 %s88, 1
      %s90 = scalar_select %p87, %s88, %s89
      %p93 = pneg %p87
      %p94 = scmp.eq.s32.totalorder %s10, 1
      %p95 = por %p93, %p94
      %p96 = scmp.ne.s32.totalorder %s88, %s91
      %p97 = scmp.eq.s32.totalorder %s10, 0
      %p98 = por %p96, %p97
      %p99 = scmp.ne.s32.totalorder %s88, %s91
      %p100 = scmp.eq.s32.totalorder %s15, 1
      %p101 = por %p99, %p100
      %p102 = scmp.ne.s32.totalorder %s91, %s92
      %p103 = scmp.eq.s32.totalorder %s15, 0
      %p104 = por %p102, %p103
      %p105 = scmp.ne.s32.totalorder %s91, %s92
      %p106 = scmp.eq.s32.totalorder %s16, 1
      %p107 = por %p105, %p106
      %p109 = scmp.ne.s32.totalorder %s92, %s108
      %p110 = scmp.eq.s32.totalorder %s16, 0
      %p111 = por %p109, %p110
      %p112 = scmp.le.s32.totalorder 1, %s10
      %p113 = scmp.lt.s32.totalorder %s10, 3
      %p114 = pnand %p112, %p113
      %p115 = pneg %p114
      // Predicated region
      $region9: #{colbert_forward.3} parent=5 // pred_check
        _
      $region10: #{colbert_forward.3} parent=5 // pred_check_branch
        %117 = sbr.rel (%p114) target = $region12
      $region11: #{colbert_forward.3} parent=5 // pred_region
        %s118 = ssub.s32 %s10, 1
        // Predicated region
        $region13: #{colbert_forward.3} parent=11 // pred_check
          %p119 = pneg %p31
        $region14: #{colbert_forward.3} parent=11 // pred_check_branch
          %121 = sbr.rel (%p119) target = $region16
        $region15: #{colbert_forward.3} parent=11 // pred_region
          %s123 = ssub.s32 16, 16
          %124 = vsyncadd [#allocation3], %s123
          %s126 = sshll.u32 %s0, 4
          %s127 = int_to_ptr.vmem [resolvable:$true] %s126
          %129 = dma.vmem_to_smem %s127, 16, [#allocation2], [#allocation3]
        $region16: #{colbert_forward.3} parent=11 // pred_fallthru
          _
        // Predicated region
        $region17: #{colbert_forward.3} parent=11 // pred_check
          %p130 = pneg %p78
        $region18: #{colbert_forward.3} parent=11 // pred_check_branch
          %132 = sbr.rel (%p130) target = $region20
        $region19: #{colbert_forward.3} parent=11 // pred_region
          _
        $region20: #{colbert_forward.3} parent=11 // pred_fallthru
          _
      $region12: #{colbert_forward.3} parent=5 // pred_fallthru
        _
      %p133 = scmp.lt.s32.totalorder %s10, 2
      // Predicated region
      $region21: #{colbert_forward.3} parent=5 // pred_check
        %p134 = pneg %p133
      $region22: #{colbert_forward.3} parent=5 // pred_check_branch
        %136 = sbr.rel (%p134) target = $region24
      $region23: #{colbert_forward.3} parent=5 // pred_region
        // Predicated region
        $region25: #{colbert_forward.3} parent=23 // pred_check
          %p137 = pneg %p51
        $region26: #{colbert_forward.3} parent=23 // pred_check_branch
          %139 = sbr.rel (%p137) target = $region28
        $region27: #{colbert_forward.3} parent=23 // pred_region
          %p140 = scmp.lt.s32.totalorder %s10, 1
          %s141 = scalar_select %p140, %s10, 1
          %s142 = smul.addr %s141, 4
          %s143 = scalar_lea.vmem %s1, %s142
        $region28: #{colbert_forward.3} parent=23 // pred_fallthru
          _
      $region24: #{colbert_forward.3} parent=5 // pred_fallthru
        _
      %p144 = scmp.le.s32.totalorder 1, %s10
      %p145 = scmp.lt.s32.totalorder %s10, 3
      %p146 = pnand %p144, %p145
      %p147 = pneg %p146
      // Predicated region
      $region29: #{colbert_forward.3} parent=5 // pred_check
        _
      $region30: #{colbert_forward.3} parent=5 // pred_check_branch
        %149 = sbr.rel (%p146) target = $region32
      $region31: #{colbert_forward.3} parent=5 // pred_region
        %s150 = ssub.s32 %s10, 1
        // Predicated region
        $region33: #{colbert_forward.3} parent=31 // pred_check
          %p151 = pneg %p31
        $region34: #{colbert_forward.3} parent=31 // pred_check_branch
          %153 = sbr.rel (%p151) target = $region36
        $region35: #{colbert_forward.3} parent=31 // pred_region
          %154 = dma.done [#allocation3], 16
        $region36: #{colbert_forward.3} parent=31 // pred_fallthru
          _
        %155 = sfence
        %p156 = pneg %p31
        %p157 = pneg %p28
        %p158 = scmp.lt.s32.totalorder %s15, 1
        %s159 = scalar_select %p158, %s15, 1
        %s160 = smul.addr %s159, 4
        %s161 = scalar_lea.vmem %s1, %s160
        %p162 = pneg %p57
        %p163 = pneg %p54
        %p164 = pneg %p78
        %p165 = pneg %p75
        %p166 = pneg %p104
        %p167 = pneg %p101
        %p168 = scmp.lt.s32.totalorder %s15, 1
        %s169 = scalar_select %p168, %s15, 1
        %s170 = scalar_lea.vmem %s3, %s169
        %p171 = scmp.lt.s32.totalorder %s15, 1
        %s172 = scalar_select %p171, %s15, 1
        %s173 = smul.addr %s172, 4
        %s174 = scalar_lea.vmem %s1, %s173
        %p175 = scmp.lt.s32.totalorder %s15, 1
        %s176 = scalar_select %p175, %s15, 1
        %s177 = scalar_lea.vmem %s3, %s176
        %v179 = vld [vmem:[%s174] sm:$0xf]
        %v180 = vld [vmem:[%s2] sm:$0xf]
        %v181 = vld [vmem:[%s2 + $0x4] sm:$0xf]
        %v182 = vld [vmem:[%s2 + $0x8] sm:$0xf]
        %v183 = vld [vmem:[%s2 + $0xc] sm:$0xf]
        %v184 = vld [vmem:[%s2 + $0x10] sm:$0xf]
        %v185 = vld [vmem:[%s2 + $0x14] sm:$0xf]
        %v186 = vld [vmem:[%s2 + $0x18] sm:$0xf]
        %v187 = vld [vmem:[%s2 + $0x1c] sm:$0xf]
        %v188 = vld [vmem:[%s2 + $0x20] sm:$0xf]
        %v189 = vld [vmem:[%s2 + $0x24] sm:$0xf]
        %v190 = vld [vmem:[%s2 + $0x28] sm:$0xf]
        %v191 = vld [vmem:[%s2 + $0x2c] sm:$0xf]
        %v204 = vunpack.c.l.b16 %v180
        %v205 = vunpack.c.l.b16 %v181
        %v206 = vunpack.c.l.b16 %v182
        %v207 = vunpack.c.l.b16 %v183
        %v208 = vunpack.c.l.b16 %v184
        %v209 = vunpack.c.l.b16 %v185
        %v210 = vunpack.c.l.b16 %v186
        %v211 = vunpack.c.l.b16 %v187
        %v212 = vunpack.c.l.b16 %v188
        %v213 = vunpack.c.l.b16 %v189
        %v214 = vunpack.c.l.b16 %v190
        %v215 = vunpack.c.l.b16 %v191
        %v216 = vpack.c.b16 %v205, %v204
        %v217 = vpack.c.b16 %v207, %v206
        %v218 = vpack.c.b16 %v209, %v208
        %v219 = vpack.c.b16 %v211, %v210
        %v220 = vpack.c.b16 %v213, %v212
        %v221 = vpack.c.b16 %v215, %v214
        %vm222 = vcmask 261120
        %v224 = vsel %vm222, %v179, 0
        %v227 = vsel %vm222, %v216, 0
        %v230 = vsel %vm222, %v217, 0
        %v233 = vsel %vm222, %v218, 0
        %v236 = vsel %vm222, %v219, 0
        %v239 = vsel %vm222, %v220, 0
        %v242 = vsel %vm222, %v221, 0
        %244 = vmatprep.subr.bf16.mxu0 0
        %245 = vmatpush1.bf16.xpose.msra.mxu0 %v227
        %246 = vmatprep.subr.bf16.mxu0 0
        %247 = vmatpush1.bf16.xpose.msra.mxu0 %v230
        %248 = vmatprep.subr.bf16.mxu0 0
        %249 = vmatpush1.bf16.xpose.msra.mxu0 %v233
        %250 = vmatprep.subr.bf16.mxu0 0
        %251 = vmatpush1.bf16.xpose.msra.mxu0 %v236
        %252 = vmatprep.subr.bf16.mxu0 0
        %253 = vmatpush1.bf16.xpose.msra.mxu0 %v239
        %254 = vmatprep.subr.bf16.mxu0 0
        %255 = vmatpush1.bf16.xpose.msra.mxu0 %v242
        %256 = vmatprep.subr.bf16.mxu0 0
        %257 = vmatpush1.bf16.xpose.msra.mxu0 0
        %258 = vmatprep.subr.bf16.mxu0 0
        %259 = vmatpush1.bf16.xpose.msra.mxu0 0
        %260 = vmatprep.subr.bf16.mxu0 0
        %261 = vmatpush1.bf16.xpose.msra.mxu0 0
        %262 = vmatprep.subr.bf16.mxu0 0
        %263 = vmatpush1.bf16.xpose.msra.mxu0 0
        %264 = vmatprep.subr.bf16.mxu0 0
        %265 = vmatpush1.bf16.xpose.msra.mxu0 0
        %266 = vmatprep.subr.bf16.mxu0 0
        %267 = vmatpush1.bf16.xpose.msra.mxu0 0
        %268 = vmatprep.subr.bf16.mxu0 0
        %269 = vmatpush1.bf16.xpose.msra.mxu0 0
        %270 = vmatprep.subr.bf16.mxu0 0
        %271 = vmatpush1.bf16.xpose.msra.mxu0 0
        %272 = vmatprep.subr.bf16.mxu0 0
        %273 = vmatpush1.bf16.xpose.msra.mxu0 0
        %274 = vmatprep.subr.bf16.mxu0 0
        %275 = vmatpush1.bf16.xpose.msra.mxu0 0
        %276 = vmatprep.mubr.bf16.mxu0 0
        %277 = vmatmul.mubr.bf16.gmra.mrb[0].mxu0 %v224
        %v278 = vpop.f32.mrb[0].mxu0
        %v279 = vadd.f32 0.0, %v278
        %v280 = vpop.f32.mrb[0].mxu0
        %v281 = vpop.f32.mrb[0].mxu0
        %v282 = vpop.f32.mrb[0].mxu0
        %283 = vdwg.mxu0
        %vm284 = vcmask 130048
        %v285 = vsel %vm284, %v279, -inf
        %286 = vmax.xlane.f32.xlu0 %v285
        %v287 = vpop.xlane.xlu0 %286
        %vm288 = vcmask 261248
        %v289 = vsel %vm288, %v279, -inf
        %290 = vmax.xlane.f32.xlu0 %v289
        %v291 = vpop.xlane.xlu0 %290
        %vm292 = vcmask 392448
        %v293 = vsel %vm292, %v279, -inf
        %294 = vmax.xlane.f32.xlu0 %v293
        %v295 = vpop.xlane.xlu0 %294
        %vm296 = vcmask 523648
        %v297 = vsel %vm296, %v279, -inf
        %298 = vmax.xlane.f32.xlu0 %v297
        %v299 = vpop.xlane.xlu0 %298
        %vm300 = vcmask 654848
        %v301 = vsel %vm300, %v279, -inf
        %302 = vmax.xlane.f32.xlu0 %v301
        %v303 = vpop.xlane.xlu0 %302
        %vm304 = vcmask 786048
        %v305 = vsel %vm304, %v279, -inf
        %306 = vmax.xlane.f32.xlu0 %v305
        %v307 = vpop.xlane.xlu0 %306
        %vm308 = vcmask 7168
        %v309 = vsel %vm308, %v287, %v291
        %vm310 = vcmask 15360
        %v311 = vsel %vm310, %v309, %v295
        %vm312 = vcmask 23552
        %v313 = vsel %vm312, %v311, %v299
        %vm314 = vcmask 31744
        %v315 = vsel %vm314, %v313, %v303
        %vm316 = vcmask 39936
        %v317 = vsel %vm316, %v315, %v307
        %vm318 = vcmask 48128
        %v319 = vsel %vm318, %v317, 0.0
        %v320 = vrot.slane %v319, 4
        %v321 = vadd.f32 %v319, %v320
        %v322 = vrot.slane %v321, 2
        %v323 = vadd.f32 %v321, %v322
        %v324 = vrot.slane %v323, 1
        %v325 = vadd.f32 %v323, %v324
        %s326 = sld [smem:[#allocation2 + %s15]]
        %v327 = vstv %s326
        %v328 = vmul.f32 %v325, %v327
        %vm329 = vcmask 40960
        %330 = vst.msk [vmem:[%s177] sm:$0x1] %vm329, %v328
        %p331 = scmp.lt.s32.totalorder %s15, 1
        %s332 = scalar_select %p331, %s15, 1
        %s333 = scalar_lea.vmem %s3, %s332
        // Predicated region
        $region37: #{colbert_forward.3} parent=31 // pred_check
          %p334 = pneg %p101
        $region38: #{colbert_forward.3} parent=31 // pred_check_branch
          %336 = sbr.rel (%p334) target = $region40
        $region39: #{colbert_forward.3} parent=31 // pred_region
          _
        $region40: #{colbert_forward.3} parent=31 // pred_fallthru
          _
      $region32: #{colbert_forward.3} parent=5 // pred_fallthru
        _
      %p337 = scmp.le.s32.totalorder 2, %s10
      // Predicated region
      $region41: #{colbert_forward.3} parent=5 // pred_check
        %p338 = pneg %p337
      $region42: #{colbert_forward.3} parent=5 // pred_check_branch
        %340 = sbr.rel (%p338) target = $region44
      $region43: #{colbert_forward.3} parent=5 // pred_region
        %s341 = ssub.s32 %s10, 2
        // Predicated region
        $region45: #{colbert_forward.3} parent=43 // pred_check
          %p342 = pneg %p107
        $region46: #{colbert_forward.3} parent=43 // pred_check_branch
          %344 = sbr.rel (%p342) target = $region48
        $region47: #{colbert_forward.3} parent=43 // pred_region
          %p345 = scmp.lt.s32.totalorder %s16, 1
          %s346 = scalar_select %p345, %s16, 1
          %s347 = scalar_lea.vmem %s3, %s346
        $region48: #{colbert_forward.3} parent=43 // pred_fallthru
          _
      $region44: #{colbert_forward.3} parent=5 // pred_fallthru
        _
    $region6: #{colbert_forward.3} parent=1 // loop_footer
      %s14 = sadd.s32 1, %s10
    $region7: #{colbert_forward.3} parent=1 // loop_footer_branch
      %9 = sbr.rel target = $region3
    $region8: #{colbert_forward.3} parent=1 // loop_exit
      _
    %348 = vsyncpa [#allocation3], 1
    %s349 = scalar_lea.sflag [#allocation3], 1
    %350 = vsyncpa %s349, 1

</llo_original>
